<compile_context>
chip_gen: v7x
topology: tpu7x:2x2x1
jax: 0.10.0
libtpu: 0.0.40
codegen_flags: <defaults>
</compile_context>

<pallas_src>
import functools

import jax
import jax.numpy as jnp
from jax.experimental import pallas as pl
from jax.experimental.pallas import tpu as pltpu


# ----------------------------------------------------------------------------
# Tiling helpers.
# ----------------------------------------------------------------------------
def _default_cout_tile():
    # v5e MXU is 4x128x128: N=256 gives no extra fill but doubles accumulator
    # pressure, so use 128 there; 256 on v6e/v7x (2x256x256 MXU).
    try:
        kind = jax.devices()[0].device_kind.lower()
    except Exception:
        return 256
    if "v5 lite" in kind or "v5e" in kind or "v5litepod" in kind:
        return 128
    return 256


def _pick_row_tile(h, pool, max_rows):
    """Largest divisor of h that is <= max_rows (and even when pooling)."""
    step = 2 if pool else 1
    best = step
    for t in range(step, min(h, max_rows) + 1, step):
        if h % t == 0:
            best = t
    return best


def _pick_chunk_rows(rows, w, pool, target_px):
    """Largest divisor of `rows` whose row-chunk has <= target_px pixels."""
    step = 2 if pool else 1
    best = step
    for c in range(step, rows + 1, step):
        if rows % c == 0 and c * w <= target_px:
            best = c
    return best


# ----------------------------------------------------------------------------
# General 3x3 same-padding conv: flat zero-haloed bf16 VMEM scratch (built once
# per image), shifted contiguous tap loads, bf16 MXU matmuls with f32
# accumulation per small row chunk, fused ReLU / 2x2 max-pool epilogue.
# ----------------------------------------------------------------------------
def _conv3x3_kernel(x_ref, w_ref, b_ref, o_ref, xpad_ref, *,
                    H, W, L, TH, CH, BH, relu_in, relu_out, pool, kstack):
    # x_ref   : (1, H, W, Cin)            full image (invariant over h/c axes)
    # w_ref   : (3, 3*Cin, CT) bf16       if kstack  (per-dy K-stacked taps)
    #           (9,   Cin, CT) bf16       otherwise  (tap = (dy+1)*3 + dx+1)
    # b_ref   : (1, CT) f32
    # o_ref   : (1, THo, Wo, CT)          output row band
    # xpad_ref: (2*L + H*W, KS*Cin) bf16  flat scratch, L zero halo rows/side
    cin = x_ref.shape[-1]
    ct = o_ref.shape[-1]
    HW = H * W
    npx = CH * W                       # pixels per inner accumulation chunk
    cho = CH // 2 if pool else CH      # output rows stored per chunk

    # ---- build the zero-haloed bf16 image scratch once per image ----------
    @pl.when(jnp.logical_and(pl.program_id(1) == 0, pl.program_id(2) == 0))
    def _build_halo_scratch():
        zpad = jnp.zeros((L, xpad_ref.shape[-1]), jnp.bfloat16)
        xpad_ref[pl.ds(0, L), :] = zpad
        xpad_ref[pl.ds(L + HW, L), :] = zpad
        # Pass A: relu_in + f32->bf16 cast once, into channel block 0.
        for bi in range(H // BH):
            xc = x_ref[0, pl.ds(bi * BH, BH), :, :]
            if relu_in:
                xc = jnp.maximum(xc, 0.0)
            xc = xc.astype(jnp.bfloat16).reshape(BH * W, cin)
            if kstack:
                xpad_ref[pl.ds(L + bi * BH * W, BH * W), 0:cin] = xc
            else:
                xpad_ref[pl.ds(L + bi * BH * W, BH * W), :] = xc
        if kstack:
            # Pass B: append column-masked dx=-1 / dx=+1 neighbours (read back
            # at +-1 flat-pixel offsets; zero halo rows make the image edges
            # come out as zeros).  Each dy then needs a single K=3*Cin matmul
            # with no masks in the hot loop.
            colb = jax.lax.broadcasted_iota(jnp.int32, (BH * W, 1), 0) % W
            for bi in range(H // BH):
                q0 = L + bi * BH * W
                xc = xpad_ref[pl.ds(q0, BH * W), 0:cin]
                lft = jnp.where(colb == 0, 0.0,
                                xpad_ref[pl.ds(q0 - 1, BH * W), 0:cin])
                rgt = jnp.where(colb == W - 1, 0.0,
                                xpad_ref[pl.ds(q0 + 1, BH * W), 0:cin])
                xpad_ref[pl.ds(q0, BH * W), :] = jnp.concatenate(
                    [xc, lft, rgt], axis=-1)

    # ---- compute this (h, c) output band, one small row chunk at a time ----
    if not kstack:
        colc = jax.lax.broadcasted_iota(jnp.int32, (npx, 1), 0) % W

    row0 = pl.program_id(1) * TH
    for ci in range(TH // CH):
        q0 = (row0 + ci * CH) * W                  # first flat pixel of chunk
        acc = jnp.zeros((npx, ct), jnp.float32)
        if kstack:
            for dy in (-1, 0, 1):
                t = xpad_ref[pl.ds(L + q0 + dy * W, npx), :]
                acc += jnp.dot(t, w_ref[dy + 1],
                               preferred_element_type=jnp.float32)
        else:
            for dy in (-1, 0, 1):
                for dx in (-1, 0, 1):
                    tap = (dy + 1) * 3 + (dx + 1)
                    t = xpad_ref[pl.ds(L + q0 + dy * W + dx, npx), :]
                    if dx == -1:                   # left neighbour invalid at col 0
                        t = jnp.where(colc >= 1, t, 0.0)
                    elif dx == 1:                  # right neighbour invalid at col W-1
                        t = jnp.where(colc < W - 1, t, 0.0)
                    acc += jnp.dot(t, w_ref[tap],
                                   preferred_element_type=jnp.float32)
        acc = acc + b_ref[...]
        if relu_out:
            acc = jnp.maximum(acc, 0.0)
        a = acc.reshape(CH, W, ct)
        if pool:                                   # fused 2x2 stride-2 max pool
            a = jnp.max(a.reshape(CH // 2, 2, W, ct), axis=1)
            a = jnp.max(a.reshape(CH // 2, W // 2, 2, ct), axis=2)
        o_ref[:, pl.ds(ci * cho, cho), :, :] = a[None].astype(o_ref.dtype)


def conv3x3(x_nhwc, w, b, *, relu_in=False, relu_out=False, pool=False,
            out_dtype=jnp.float32, cout_tile=None, max_tile_rows=32,
            chunk_target_px=256):
    N, H, W, Cin = x_nhwc.shape
    kstack = (w.shape[0] == 3)                 # weights packed as (3, 3*Cin, Cout)
    Cout = w.shape[-1]
    if cout_tile is None:
        cout_tile = _default_cout_tile()
    CT = min(Cout, cout_tile)
    TH = _pick_row_tile(H, pool, max_tile_rows)        # output band (input rows)
    CH = _pick_chunk_rows(TH, W, pool, chunk_target_px)  # inner acc chunk rows
    BH = _pick_chunk_rows(H, W, False, 2048)             # scratch-build chunk rows
    Ho, Wo = (H // 2, W // 2) if pool else (H, W)
    THo = TH // 2 if pool else TH
    HW = H * W
    L = 8 * pl.cdiv(W + 1, 8)                  # zero-halo rows each side (>= W+1)
    KS = 3 if kstack else 1

    kernel = functools.partial(
        _conv3x3_kernel, H=H, W=W, L=L, TH=TH, CH=CH, BH=BH,
        relu_in=relu_in, relu_out=relu_out, pool=pool, kstack=kstack)

    return pl.pallas_call(
        kernel,
        out_shape=jax.ShapeDtypeStruct((N, Ho, Wo, Cout), out_dtype),
        grid_spec=pltpu.PrefetchScalarGridSpec(
            num_scalar_prefetch=0,
            grid=(N, H // TH, Cout // CT),
            in_specs=[
                # Full image; re-DMA'd only when n changes (block index is
                # invariant over the h / cout axes).
                pl.BlockSpec((1, H, W, Cin), lambda n, h, c: (n, 0, 0, 0)),
                pl.BlockSpec((w.shape[0], w.shape[1], CT),
                             lambda n, h, c: (0, 0, c)),
                pl.BlockSpec((1, CT), lambda n, h, c: (0, c)),
            ],
            out_specs=pl.BlockSpec((1, THo, Wo, CT), lambda n, h, c: (n, h, 0, c)),
            scratch_shapes=[pltpu.VMEM((2 * L + HW, KS * Cin), jnp.bfloat16)],
        ),
        compiler_params=pltpu.CompilerParams(
            # Scratch is built at (h==0, c==0): only N may be megacore-sharded.
            dimension_semantics=("parallel", "arbitrary", "arbitrary"),
            vmem_limit_bytes=64 * 1024 * 1024),
    )(x_nhwc, w, b.reshape(1, Cout))


# ----------------------------------------------------------------------------
# conv1 (Cin=3): im2col in the wrapper (tiny 3-channel input, bf16 cols), a
# single K=32 bf16 matmul per row chunk in the kernel.
# ----------------------------------------------------------------------------
def _conv1_kernel(x_ref, w_ref, b_ref, o_ref, *, W, TH, CH):
    k = x_ref.shape[-1]
    cout = o_ref.shape[-1]
    for ci in range(TH // CH):
        x = x_ref[0, pl.ds(ci * CH, CH), :, :].reshape(CH * W, k)
        acc = jnp.dot(x, w_ref[...], preferred_element_type=jnp.float32)
        acc = acc + b_ref[...]
        o_ref[:, pl.ds(ci * CH, CH), :, :] = (
            acc.reshape(CH, W, cout)[None].astype(o_ref.dtype))


def _im2col_3x3(x):
    # (N, H, W, 3) -> (N, H, W, 32) bf16: 27 real channels (dy, dx, c) + 5 zeros.
    # TODO(synk): fold the im2col into the Pallas kernel to avoid the HBM round
    # trip (conv1 is ~1% of FLOPs, so low priority).
    N, H, W, C = x.shape
    xp = jnp.pad(x, ((0, 0), (1, 1), (1, 1), (0, 0)))
    cols = [xp[:, dy:dy + H, dx:dx + W, :] for dy in range(3) for dx in range(3)]
    cols.append(jnp.zeros((N, H, W, 32 - 9 * C), x.dtype))
    return jnp.concatenate(cols, axis=-1).astype(jnp.bfloat16)


def conv1_im2col(x_cols, w, b, *, max_tile_rows=16, chunk_target_px=512):
    N, H, W, K = x_cols.shape
    Cout = w.shape[-1]
    TH = _pick_row_tile(H, False, max_tile_rows)
    CH = _pick_chunk_rows(TH, W, False, chunk_target_px)
    return pl.pallas_call(
        functools.partial(_conv1_kernel, W=W, TH=TH, CH=CH),
        out_shape=jax.ShapeDtypeStruct((N, H, W, Cout), jnp.float32),
        grid_spec=pltpu.PrefetchScalarGridSpec(
            num_scalar_prefetch=0,
            grid=(N, H // TH),
            in_specs=[
                pl.BlockSpec((1, TH, W, K), lambda n, h: (n, h, 0, 0)),
                pl.BlockSpec((K, Cout), lambda n, h: (0, 0)),
                pl.BlockSpec((1, Cout), lambda n, h: (0, 0)),
            ],
            out_specs=pl.BlockSpec((1, TH, W, Cout), lambda n, h: (n, h, 0, 0)),
        ),
        compiler_params=pltpu.CompilerParams(
            dimension_semantics=("parallel", "arbitrary"),
            vmem_limit_bytes=64 * 1024 * 1024),
    )(x_cols, w, b.reshape(1, Cout))


# ----------------------------------------------------------------------------
# Vgg19 module (features[0:20]) with deterministic synthetic weights.
# ----------------------------------------------------------------------------
class Vgg19Pallas:
    # (Cout, Cin) of the conv layers used: features 0,2,5,7,10,12,14,16,19
    _CONV_SPECS = [(64, 3), (64, 64), (128, 64), (128, 128), (256, 128),
                   (256, 256), (256, 256), (256, 256), (512, 256)]
    _KSTACK_MAX_CIN = 128   # dx-tap K-stacking only where 3x scratch is cheap

    def __init__(self, key):
        # TODO(synk): pretrained-weight loading (torch.load('vgg19.pth')) has no
        # in-script equivalent; weights are deterministic random instead.
        self.params = []
        for i, (cout, cin) in enumerate(self._CONV_SPECS):
            kw = jax.random.fold_in(key, 2 * i)
            kb = jax.random.fold_in(key, 2 * i + 1)
            scale = 1.0 / jnp.sqrt(9.0 * cin)
            # PyTorch conv weight layout is OIHW; transpose to HWIO for NHWC.
            w_oihw = jax.random.normal(kw, (cout, cin, 3, 3), jnp.float32) * scale
            w_hwio = jnp.transpose(w_oihw, (2, 3, 1, 0))       # (ky, kx, Cin, Cout)
            b = jax.random.normal(kb, (cout,), jnp.float32) * 0.01
            if i == 0:
                # conv1: fold the 9 taps into one (27, 64) im2col weight, pad K to 32.
                w1 = w_hwio.reshape(9 * cin, cout)
                w1 = jnp.pad(w1, ((0, 32 - 9 * cin), (0, 0)))
                self.params.append((w1.astype(jnp.bfloat16), b))
            elif cin <= self._KSTACK_MAX_CIN:
                # K-stacked per-dy weights: K layout [dx=0 | dx=-1 | dx=+1] * Cin,
                # matching the [x, left, right] channel blocks of the scratch.
                w3 = w_hwio[:, jnp.array([1, 0, 2]), :, :].reshape(3, 3 * cin, cout)
                self.params.append((w3.astype(jnp.bfloat16), b))
            else:
                # (9, Cin, Cout) bf16, tap-major to match the 9-tap loop order.
                w9 = w_hwio.reshape(9, cin, cout).astype(jnp.bfloat16)
                self.params.append((w9, b))

    def __call__(self, x_nchw):
        x = jnp.transpose(x_nchw, (0, 2, 3, 1)).astype(jnp.float32)  # -> NHWC
        p = self.params
        bf16 = jnp.bfloat16

        # slice1: Conv(3,64)
        conv1_1 = conv1_im2col(_im2col_3x3(x), *p[0])
        # slice2: ReLU -> Conv(64,64) -> ReLU -> MaxPool -> Conv(64,128)
        t = conv3x3(conv1_1, *p[1], relu_in=True, relu_out=True, pool=True,
                    out_dtype=bf16)
        conv2_1 = conv3x3(t, *p[2])
        # slice3: ReLU -> Conv(128,128) -> ReLU -> MaxPool -> Conv(128,256)
        t = conv3x3(conv2_1, *p[3], relu_in=True, relu_out=True, pool=True,
                    out_dtype=bf16)
        conv3_1 = conv3x3(t, *p[4])
        # slice4: ReLU -> Conv(256,256) -> ReLU -> Conv(256,256) -> ReLU
        #         -> Conv(256,256) -> ReLU -> MaxPool -> Conv(256,512)
        t = conv3x3(conv3_1, *p[5], relu_in=True, relu_out=True, out_dtype=bf16)
        t = conv3x3(t, *p[6], relu_out=True, out_dtype=bf16)
        t = conv3x3(t, *p[7], relu_out=True, pool=True, out_dtype=bf16)
        conv4_1 = conv3x3(t, *p[8])

        to_nchw = lambda a: jnp.transpose(a, (0, 3, 1, 2))
        return (to_nchw(conv1_1), to_nchw(conv2_1),
                to_nchw(conv3_1), to_nchw(conv4_1))


if __name__ == "__main__":
    model = Vgg19Pallas(jax.random.PRNGKey(42))
    x = jax.random.normal(jax.random.PRNGKey(0), (2, 3, 16, 16), jnp.float32)

    conv1_1, conv2_1, conv3_1, conv4_1 = jax.block_until_ready(model(x))

    assert conv1_1.shape == (2, 64, 16, 16), conv1_1.shape
    assert conv2_1.shape == (2, 128, 8, 8), conv2_1.shape
    assert conv3_1.shape == (2, 256, 4, 4), conv3_1.shape
    assert conv4_1.shape == (2, 512, 2, 2), conv4_1.shape
    for o in (conv1_1, conv2_1, conv3_1, conv4_1):
        assert jnp.all(jnp.isfinite(o))

    print("KERNEL_OK")
</pallas_src>

<mosaic_0001>
module attributes {stable_mosaic.version = 11 : i64} {
  func.func @_conv1_kernel(%arg0: i32, %arg1: i32, %arg2: memref<1x16x16x32xbf16, #tpu.memory_space<vmem>>, %arg3: memref<32x64xbf16, #tpu.memory_space<vmem>>, %arg4: memref<1x64xf32, #tpu.memory_space<vmem>>, %arg5: memref<1x16x16x64xf32, #tpu.memory_space<vmem>>) attributes {dimension_semantics = [#tpu.dimension_semantics<parallel>, #tpu.dimension_semantics<arbitrary>], iteration_bounds = array<i64: 2, 1>, scalar_prefetch = 0 : i64, scratch_operands = 0 : i64, tpu.core_type = #tpu.core_type<tc>, window_params = [{transform_indices = @transform_0, window_bounds = array<i64: 1, 16, 16, 32>}, {pipeline_mode = #tpu.pipeline_mode<synchronous>, transform_indices = @transform_1, window_bounds = array<i64: 32, 64>}, {pipeline_mode = #tpu.pipeline_mode<synchronous>, transform_indices = @transform_2, window_bounds = array<i64: 1, 64>}, {transform_indices = @transform_3, window_bounds = array<i64: 1, 16, 16, 64>}]} {
    %c0 = arith.constant 0 : index
    %c0_0 = arith.constant 0 : index
    %c0_1 = arith.constant 0 : index
    %c0_2 = arith.constant 0 : index
    %0 = vector.load %arg2[%c0, %c0_0, %c0_1, %c0_2] : memref<1x16x16x32xbf16, #tpu.memory_space<vmem>>, vector<1x16x16x32xbf16>
    %1 = vector.shape_cast %0 : vector<1x16x16x32xbf16> to vector<16x16x32xbf16>
    %2 = vector.shape_cast %1 : vector<16x16x32xbf16> to vector<256x32xbf16>
    %c0_3 = arith.constant 0 : index
    %c0_4 = arith.constant 0 : index
    %3 = vector.load %arg3[%c0_3, %c0_4] : memref<32x64xbf16, #tpu.memory_space<vmem>>, vector<32x64xbf16>
    %cst = arith.constant dense<0.000000e+00> : vector<256x64xf32>
    %4 = tpu.matmul %2, %3, %cst {dimension_numbers = #tpu.dot_dimension_numbers<[1], [0], [0], [1], [0, 0, 1, 1], [], []>} : vector<256x32xbf16>, vector<32x64xbf16>, vector<256x64xf32> -> vector<256x64xf32>
    %c0_5 = arith.constant 0 : index
    %c0_6 = arith.constant 0 : index
    %5 = vector.load %arg4[%c0_5, %c0_6] : memref<1x64xf32, #tpu.memory_space<vmem>>, vector<1x64xf32>
    %6 = vector.broadcast %5 : vector<1x64xf32> to vector<256x64xf32>
    %7 = arith.addf %4, %6 : vector<256x64xf32>
    %8 = vector.shape_cast %7 : vector<256x64xf32> to vector<16x16x64xf32>
    %9 = vector.shape_cast %8 : vector<16x16x64xf32> to vector<1x16x16x64xf32>
    %c0_7 = arith.constant 0 : index
    %c0_8 = arith.constant 0 : index
    %c0_9 = arith.constant 0 : index
    %c0_10 = arith.constant 0 : index
    %10 = vector.load %arg5[%c0_7, %c0_8, %c0_9, %c0_10] : memref<1x16x16x64xf32, #tpu.memory_space<vmem>>, vector<1x16x16x64xf32>
    tpu.vector_store %arg5[%c0_7, %c0_8, %c0_9, %c0_10], %9 {strides = array<i32>} : memref<1x16x16x64xf32, #tpu.memory_space<vmem>>, vector<1x16x16x64xf32>,
    return
  }
  func.func @transform_0(%arg0: i32, %arg1: i32) -> (i32, i32, i32, i32) {
    %c0_i32 = arith.constant 0 : i32
    %c0_i32_0 = arith.constant 0 : i32
    %c0_i32_1 = arith.constant 0 : i32
    return %arg0, %arg1, %c0_i32, %c0_i32_0 : i32, i32, i32, i32
  }
  func.func @transform_1(%arg0: i32, %arg1: i32) -> (i32, i32) {
    %c0_i32 = arith.constant 0 : i32
    %c0_i32_0 = arith.constant 0 : i32
    %c0_i32_1 = arith.constant 0 : i32
    return %c0_i32, %c0_i32_0 : i32, i32
  }
  func.func @transform_2(%arg0: i32, %arg1: i32) -> (i32, i32) {
    %c0_i32 = arith.constant 0 : i32
    %c0_i32_0 = arith.constant 0 : i32
    %c0_i32_1 = arith.constant 0 : i32
    return %c0_i32, %c0_i32_0 : i32, i32
  }
  func.func @transform_3(%arg0: i32, %arg1: i32) -> (i32, i32, i32, i32) {
    %c0_i32 = arith.constant 0 : i32
    %c0_i32_0 = arith.constant 0 : i32
    %c0_i32_1 = arith.constant 0 : i32
    return %arg0, %arg1, %c0_i32, %c0_i32_0 : i32, i32, i32, i32
  }
}

</mosaic_0001>

<llo_original>
// kernel: tpu_custom_call.1
$region0: #{tpu_custom_call.1}
  #allocation0 [shape = 'u32[]', space=smem, size = 0x4, offset = 0x4, fixed_abs, tag = 'smem constant byte address 0x4 - core index']
  #allocation1 [shape = 'u32[144,128]{1,0:T(1,128)}', space=vmem, size = 0x12000, scoped, tag = 'internal scratch']
  %s0 = inlined_call_operand.hbm [shape: bf16[2,16,16,32], index: 0, kind: input, shape index: {}]
  %s1 = inlined_call_operand.hbm [shape: bf16[32,64], index: 1, kind: input, shape index: {}]
  %s2 = inlined_call_operand.hbm [shape: f32[1,64], index: 2, kind: input, shape index: {}]
  %s3 = inlined_call_operand.hbm [shape: f32[2,16,16,64], index: 3, kind: output, shape index: {}]
  %s4 = sld [smem:[#allocation0]]
  $region57: #{tpu_custom_call.1} parent=0
    _
  %s6 = ssub.s32 1, %s4
  %s7 = scalar_select 0, %s6, %s4
  $region1: #{tpu_custom_call.1} parent=0
    #allocation2 [shape = 'u8[131072]{0}', space=vmem, size = 0x20000, scoped, tag = 'input window, operand 0']
    #allocation3 [shape = 's32[2]{0}', space=sflag, size = 0x8, scoped, tag = 'scoped memory for tpu_custom_call.1']
    #allocation4 [shape = 's32[2]{0}', space=sflag, size = 0x8, scoped, tag = 'scoped memory for tpu_custom_call.1']
    #allocation5 [shape = 'u8[8192]{0}', space=vmem, size = 0x2000, scoped, tag = 'input window, operand 1, single buffered']
    #allocation6 [shape = 's32[1]{0}', space=sflag, size = 0x4, scoped, tag = 'scoped memory for tpu_custom_call.1']
    #allocation7 [shape = 'u8[512]{0}', space=vmem, size = 0x400, scoped, tag = 'input window, operand 2, single buffered']
    #allocation8 [shape = 'u8[262144]{0}', space=vmem, size = 0x40000, scoped, tag = 'output window, operand 0']
    %8 = vsyncpa [#allocation3], 0
    %s9 = scalar_lea.sflag [#allocation3], 1
    %10 = vsyncpa %s9, 0
    %11 = vsyncpa [#allocation6], 0
    %12 = vsyncpa [#allocation4], 0
    %s13 = scalar_lea.sflag [#allocation4], 1
    %14 = vsyncpa %s13, 0
    loop: start=0, step=1, limit=4
    $region2: #{tpu_custom_call.1} parent=1 // loop_pre_header
      _
    $region3: #{tpu_custom_call.1} parent=1 // loop_header
      %s16 = sphi 0, %s20
      %p17 = scmp.ge.s32.totalorder %s16, 4
      %s23 = sphi 0, %s35
      %s24 = sphi 0, %s31
      %s25 = sphi 0, %s23
      %s26 = sphi 0, %s24
      %s27 = sphi 0, %s25
      %s28 = sphi 0, %s26
      %s40 = sphi 0, %s42
      %s43 = sphi 0, %s40
      %s44 = sphi 0, %s43
      %s60 = sphi 0, %s44
      %s64 = sphi 0, %s64
      %s66 = sphi 0, %s64
      %s67 = sphi 0, %s66
      %s81 = sphi 0, %s67
      %s85 = sphi 0, %s85
      %s87 = sphi 0, %s85
      %s88 = sphi 0, %s87
      %s102 = sphi 0, %s88
      %s110 = sphi 0, %s112
      %s113 = sphi 0, %s110
      %s114 = sphi 0, %s113
      %s130 = sphi 0, %s114
    $region4: #{tpu_custom_call.1} parent=1 // loop_header_branch
      %19 = sbr.rel (%p17) target = $region8
    $region5: #{tpu_custom_call.1} parent=1 // loop_body
      %s21 = ssub.s32 %s16, 1
      %s22 = ssub.s32 %s16, 2
      %s29 = sadd.s32 1, %s24
      %p30 = scmp.ge.s32.totalorder %s29, 1
      %s31 = scalar_select %p30, 0, %s29
      %s32 = sadd.s32 1, %s23
      %s33 = scalar_select %p30, %s32, %s23
      %p34 = scmp.ge.s32.totalorder %s33, 2
      %s35 = scalar_select %p34, 0, %s33
      %s36 = ssub.s32 %s23, %s35
      %s37 = ssub.s32 %s24, %s31
      %s38 = sor.u32 %s36, %s37
      %p39 = scmp.eq.s32.totalorder %s38, 0
      %s41 = sadd.s32 %s40, 1
      %s42 = scalar_select %p39, %s40, %s41
      %p45 = pneg %p39
      %p46 = scmp.eq.s32.totalorder %s16, 1
      %p47 = por %p45, %p46
      %p48 = scmp.ne.s32.totalorder %s40, %s43
      %p49 = scmp.eq.s32.totalorder %s16, 0
      %p50 = por %p48, %p49
      %p51 = scmp.ne.s32.totalorder %s40, %s43
      %p52 = scmp.eq.s32.totalorder %s21, 1
      %p53 = por %p51, %p52
      %p54 = scmp.ne.s32.totalorder %s43, %s44
      %p55 = scmp.eq.s32.totalorder %s21, 0
      %p56 = por %p54, %p55
      %p57 = scmp.ne.s32.totalorder %s43, %s44
      %p58 = scmp.eq.s32.totalorder %s22, 1
      %p59 = por %p57, %p58
      %p61 = scmp.ne.s32.totalorder %s44, %s60
      %p62 = scmp.eq.s32.totalorder %s22, 0
      %p63 = por %p61, %p62
      %s65 = sadd.s32 %s64, 1
      %p68 = scmp.eq.s32.totalorder %s16, 1
      %p69 = scmp.ne.s32.totalorder %s64, %s66
      %p70 = scmp.eq.s32.totalorder %s16, 0
      %p71 = por %p69, %p70
      %p72 = scmp.ne.s32.totalorder %s64, %s66
      %p73 = scmp.eq.s32.totalorder %s21, 1
      %p74 = por %p72, %p73
      %p75 = scmp.ne.s32.totalorder %s66, %s67
      %p76 = scmp.eq.s32.totalorder %s21, 0
      %p77 = por %p75, %p76
      %p78 = scmp.ne.s32.totalorder %s66, %s67
      %p79 = scmp.eq.s32.totalorder %s22, 1
      %p80 = por %p78, %p79
      %p82 = scmp.ne.s32.totalorder %s67, %s81
      %p83 = scmp.eq.s32.totalorder %s22, 0
      %p84 = por %p82, %p83
      %s86 = sadd.s32 %s85, 1
      %p89 = scmp.eq.s32.totalorder %s16, 1
      %p90 = scmp.ne.s32.totalorder %s85, %s87
      %p91 = scmp.eq.s32.totalorder %s16, 0
      %p92 = por %p90, %p91
      %p93 = scmp.ne.s32.totalorder %s85, %s87
      %p94 = scmp.eq.s32.totalorder %s21, 1
      %p95 = por %p93, %p94
      %p96 = scmp.ne.s32.totalorder %s87, %s88
      %p97 = scmp.eq.s32.totalorder %s21, 0
      %p98 = por %p96, %p97
      %p99 = scmp.ne.s32.totalorder %s87, %s88
      %p100 = scmp.eq.s32.totalorder %s22, 1
      %p101 = por %p99, %p100
      %p103 = scmp.ne.s32.totalorder %s88, %s102
      %p104 = scmp.eq.s32.totalorder %s22, 0
      %p105 = por %p103, %p104
      %s106 = ssub.s32 %s23, %s35
      %s107 = ssub.s32 %s24, %s31
      %s108 = sor.u32 %s106, %s107
      %p109 = scmp.eq.s32.totalorder %s108, 0
      %s111 = sadd.s32 %s110, 1
      %s112 = scalar_select %p109, %s110, %s111
      %p115 = pneg %p109
      %p116 = scmp.eq.s32.totalorder %s16, 1
      %p117 = por %p115, %p116
      %p118 = scmp.ne.s32.totalorder %s110, %s113
      %p119 = scmp.eq.s32.totalorder %s16, 0
      %p120 = por %p118, %p119
      %p121 = scmp.ne.s32.totalorder %s110, %s113
      %p122 = scmp.eq.s32.totalorder %s21, 1
      %p123 = por %p121, %p122
      %p124 = scmp.ne.s32.totalorder %s113, %s114
      %p125 = scmp.eq.s32.totalorder %s21, 0
      %p126 = por %p124, %p125
      %p127 = scmp.ne.s32.totalorder %s113, %s114
      %p128 = scmp.eq.s32.totalorder %s22, 1
      %p129 = por %p127, %p128
      %p131 = scmp.ne.s32.totalorder %s114, %s130
      %p132 = scmp.eq.s32.totalorder %s22, 0
      %p133 = por %p131, %p132
      %p134 = scmp.le.s32.totalorder 1, %s16
      %p135 = scmp.lt.s32.totalorder %s16, 3
      %p136 = pnand %p134, %p135
      %p137 = pneg %p136
      // Predicated region
      $region9: #{tpu_custom_call.1} parent=5 // pred_check
        _
      $region10: #{tpu_custom_call.1} parent=5 // pred_check_branch
        %139 = sbr.rel (%p136) target = $region12
      $region11: #{tpu_custom_call.1} parent=5 // pred_region
        %s140 = ssub.s32 %s16, 1
        // Predicated region
        $region13: #{tpu_custom_call.1} parent=11 // pred_check
          %p141 = pneg %p77
        $region14: #{tpu_custom_call.1} parent=11 // pred_check_branch
          %143 = sbr.rel (%p141) target = $region16
        $region15: #{tpu_custom_call.1} parent=11 // pred_region
          %s145 = ssub.s32 256, 256
          %146 = vsyncadd [#allocation6], %s145
          %s147 = sshll.u32 [#allocation5], 4
          %s148 = int_to_ptr.vmem [resolvable:$true] %s147
          %153 = dma.hbm_to_vmem [thread:$0]  %s1, 256, %s148, [#allocation6], 64, 64, 4
        $region16: #{tpu_custom_call.1} parent=11 // pred_fallthru
          _
        // Predicated region
        $region17: #{tpu_custom_call.1} parent=11 // pred_check
          %p154 = pneg %p98
        $region18: #{tpu_custom_call.1} parent=11 // pred_check_branch
          %156 = sbr.rel (%p154) target = $region20
        $region19: #{tpu_custom_call.1} parent=11 // pred_region
          %s158 = ssub.s32 16, 16
          %159 = vsyncadd [#allocation6], %s158
          %s161 = sshll.u32 [#allocation7], 4
          %s162 = int_to_ptr.vmem [resolvable:$true] %s161
          %164 = dma.hbm_to_vmem [thread:$0]  %s2, 16, %s162, [#allocation6]
        $region20: #{tpu_custom_call.1} parent=11 // pred_fallthru
          _
      $region12: #{tpu_custom_call.1} parent=5 // pred_fallthru
        _
      %p165 = scmp.lt.s32.totalorder %s16, 2
      // Predicated region
      $region21: #{tpu_custom_call.1} parent=5 // pred_check
        %p166 = pneg %p165
      $region22: #{tpu_custom_call.1} parent=5 // pred_check_branch
        %168 = sbr.rel (%p166) target = $region24
      $region23: #{tpu_custom_call.1} parent=5 // pred_region
        // Predicated region
        $region25: #{tpu_custom_call.1} parent=23 // pred_check
          %p169 = pneg %p50
        $region26: #{tpu_custom_call.1} parent=23 // pred_check_branch
          %171 = sbr.rel (%p169) target = $region28
        $region27: #{tpu_custom_call.1} parent=23 // pred_region
          %s172 = sand.u32 %s40, 1
          %s173 = scalar_lea.sflag [#allocation3], %s172
          %s174 = sand.u32 %s40, 1
          %s175 = smul.addr %s174, 128
          %s176 = scalar_lea.vmem [#allocation2], %s175
          %s177 = smul.u32 16, %s24
          %s179 = ssub.s32 2048, 2048
          %180 = vsyncadd %s173, %s179
          %s181 = smul.addr %s177, 2
          %s182 = smul.addr %s23, 32
          %s183 = sadd.s32 %s181, %s182
          %s184 = smul.addr %s183, 64
          %s185 = scalar_lea.hbm %s0, %s184
          %s186 = sshll.u32 %s176, 4
          %s187 = int_to_ptr.vmem [resolvable:$true] %s186
          %192 = dma.hbm_to_vmem [thread:$0]  %s185, 2048, %s187, %s173, 64, 64, 4
        $region28: #{tpu_custom_call.1} parent=23 // pred_fallthru
          _
      $region24: #{tpu_custom_call.1} parent=5 // pred_fallthru
        _
      %p193 = scmp.le.s32.totalorder 1, %s16
      %p194 = scmp.lt.s32.totalorder %s16, 3
      %p195 = pnand %p193, %p194
      %p196 = pneg %p195
      // Predicated region
      $region29: #{tpu_custom_call.1} parent=5 // pred_check
        _
      $region30: #{tpu_custom_call.1} parent=5 // pred_check_branch
        %198 = sbr.rel (%p195) target = $region32
      $region31: #{tpu_custom_call.1} parent=5 // pred_region
        %s199 = ssub.s32 %s16, 1
        %s200 = sand.u32 %s43, 1
        %s201 = scalar_lea.sflag [#allocation3], %s200
        %s202 = sand.u32 %s43, 1
        %s203 = smul.addr %s202, 128
        %s204 = scalar_lea.vmem [#allocation2], %s203
        // Predicated region
        $region33: #{tpu_custom_call.1} parent=31 // pred_check
          %p205 = pneg %p56
        $region34: #{tpu_custom_call.1} parent=31 // pred_check_branch
          %207 = sbr.rel (%p205) target = $region36
        $region35: #{tpu_custom_call.1} parent=31 // pred_region
          %208 = dma.done %s201, 2048
        $region36: #{tpu_custom_call.1} parent=31 // pred_fallthru
          _
        // Predicated region
        $region37: #{tpu_custom_call.1} parent=31 // pred_check
          %p209 = pneg %p77
        $region38: #{tpu_custom_call.1} parent=31 // pred_check_branch
          %211 = sbr.rel (%p209) target = $region40
        $region39: #{tpu_custom_call.1} parent=31 // pred_region
          %212 = dma.done [#allocation6], 256
        $region40: #{tpu_custom_call.1} parent=31 // pred_fallthru
          _
        // Predicated region
        $region41: #{tpu_custom_call.1} parent=31 // pred_check
          %p213 = pneg %p98
        $region42: #{tpu_custom_call.1} parent=31 // pred_check_branch
          %215 = sbr.rel (%p213) target = $region44
        $region43: #{tpu_custom_call.1} parent=31 // pred_region
          %216 = dma.done [#allocation6], 16
        $region44: #{tpu_custom_call.1} parent=31 // pred_fallthru
          _
        %s217 = sand.u32 %s43, 1
        %s218 = scalar_lea.sflag [#allocation3], %s217
        %s219 = sand.u32 %s43, 1
        %s220 = smul.addr %s219, 128
        %s221 = scalar_lea.vmem [#allocation2], %s220
        %p222 = pneg %p56
        %p223 = pneg %p53
        %p224 = pneg %p77
        %p225 = pneg %p74
        %p226 = pneg %p98
        %p227 = pneg %p95
        %p228 = pneg %p126
        %p229 = pneg %p123
        %s230 = sand.u32 %s113, 1
        %s231 = scalar_lea.sflag [#allocation4], %s230
        %s232 = sand.u32 %s113, 1
        %s233 = smul.addr %s232, 256
        %s234 = scalar_lea.vmem [#allocation8], %s233
        %s235 = smul.u32 16, %s26
        %s236 = smul.u32 16, %s26
        %v238 = vld [vmem:[%s204] sm:$0xf]
        %v239 = vld [vmem:[%s204 + $0x4] sm:$0xf]
        %v240 = vld [vmem:[%s204 + $0x8] sm:$0xf]
        %v241 = vld [vmem:[%s204 + $0xc] sm:$0xf]
        %v242 = vld [vmem:[%s204 + $0x10] sm:$0xf]
        %v243 = vld [vmem:[%s204 + $0x14] sm:$0xf]
        %v244 = vld [vmem:[%s204 + $0x18] sm:$0xf]
        %v245 = vld [vmem:[%s204 + $0x1c] sm:$0xf]
        %v246 = vld [vmem:[%s204 + $0x20] sm:$0xf]
        %v247 = vld [vmem:[%s204 + $0x24] sm:$0xf]
        %v248 = vld [vmem:[%s204 + $0x28] sm:$0xf]
        %v249 = vld [vmem:[%s204 + $0x2c] sm:$0xf]
        %v250 = vld [vmem:[%s204 + $0x30] sm:$0xf]
        %v251 = vld [vmem:[%s204 + $0x34] sm:$0xf]
        %v252 = vld [vmem:[%s204 + $0x38] sm:$0xf]
        %v253 = vld [vmem:[%s204 + $0x3c] sm:$0xf]
        %v254 = vld [vmem:[%s204 + $0x40] sm:$0xf]
        %v255 = vld [vmem:[%s204 + $0x44] sm:$0xf]
        %v256 = vld [vmem:[%s204 + $0x48] sm:$0xf]
        %v257 = vld [vmem:[%s204 + $0x4c] sm:$0xf]
        %v258 = vld [vmem:[%s204 + $0x50] sm:$0xf]
        %v259 = vld [vmem:[%s204 + $0x54] sm:$0xf]
        %v260 = vld [vmem:[%s204 + $0x58] sm:$0xf]
        %v261 = vld [vmem:[%s204 + $0x5c] sm:$0xf]
        %v262 = vld [vmem:[%s204 + $0x60] sm:$0xf]
        %v263 = vld [vmem:[%s204 + $0x64] sm:$0xf]
        %v264 = vld [vmem:[%s204 + $0x68] sm:$0xf]
        %v265 = vld [vmem:[%s204 + $0x6c] sm:$0xf]
        %v266 = vld [vmem:[%s204 + $0x70] sm:$0xf]
        %v267 = vld [vmem:[%s204 + $0x74] sm:$0xf]
        %v268 = vld [vmem:[%s204 + $0x78] sm:$0xf]
        %v269 = vld [vmem:[%s204 + $0x7c] sm:$0xf]
        %v270 = vld [vmem:[#allocation5] sm:$0xf]
        %v271 = vld [vmem:[#allocation5 + $0x4] sm:$0xf]
        %v272 = vld [vmem:[#allocation5 + $0x8] sm:$0xf]
        %v273 = vld [vmem:[#allocation5 + $0xc] sm:$0xf]
        %v274 = vld [vmem:[#allocation7] sm:$0x1]
        %v276 = vlaneseq
        %v277 = vshrl.u32 %v276, 7
        %v278 = vsub.s32 0, %v277
        %v279 = vrot.slane %v274, %v278
        %v313 = vunpack.c.l.b16 %v238
        %v314 = vunpack.c.l.b16 %v239
        %v315 = vunpack.c.l.b16 %v240
        %v316 = vunpack.c.l.b16 %v241
        %v317 = vunpack.c.l.b16 %v242
        %v318 = vunpack.c.l.b16 %v243
        %v319 = vunpack.c.l.b16 %v244
        %v320 = vunpack.c.l.b16 %v245
        %v321 = vunpack.c.l.b16 %v246
        %v322 = vunpack.c.l.b16 %v247
        %v323 = vunpack.c.l.b16 %v248
        %v324 = vunpack.c.l.b16 %v249
        %v325 = vunpack.c.l.b16 %v250
        %v326 = vunpack.c.l.b16 %v251
        %v327 = vunpack.c.l.b16 %v252
        %v328 = vunpack.c.l.b16 %v253
        %v329 = vunpack.c.l.b16 %v254
        %v330 = vunpack.c.l.b16 %v255
        %v331 = vunpack.c.l.b16 %v256
        %v332 = vunpack.c.l.b16 %v257
        %v333 = vunpack.c.l.b16 %v258
        %v334 = vunpack.c.l.b16 %v259
        %v335 = vunpack.c.l.b16 %v260
        %v336 = vunpack.c.l.b16 %v261
        %v337 = vunpack.c.l.b16 %v262
        %v338 = vunpack.c.l.b16 %v263
        %v339 = vunpack.c.l.b16 %v264
        %v340 = vunpack.c.l.b16 %v265
        %v341 = vunpack.c.l.b16 %v266
        %v342 = vunpack.c.l.b16 %v267
        %v343 = vunpack.c.l.b16 %v268
        %v344 = vunpack.c.l.b16 %v269
        %v345 = vpack.c.b16 %v314, %v313
        %v346 = vpack.c.b16 %v316, %v315
        %v347 = vpack.c.b16 %v318, %v317
        %v348 = vpack.c.b16 %v320, %v319
        %v349 = vpack.c.b16 %v322, %v321
        %v350 = vpack.c.b16 %v324, %v323
        %v351 = vpack.c.b16 %v326, %v325
        %v352 = vpack.c.b16 %v328, %v327
        %v353 = vpack.c.b16 %v330, %v329
        %v354 = vpack.c.b16 %v332, %v331
        %v355 = vpack.c.b16 %v334, %v333
        %v356 = vpack.c.b16 %v336, %v335
        %v357 = vpack.c.b16 %v338, %v337
        %v358 = vpack.c.b16 %v340, %v339
        %v359 = vpack.c.b16 %v342, %v341
        %v360 = vpack.c.b16 %v344, %v343
        %v365 = vunpack.c.l.b16 %v270
        %v366 = vunpack.c.l.b16 %v271
        %v367 = vunpack.c.l.b16 %v272
        %v368 = vunpack.c.l.b16 %v273
        %v369 = vpack.c.b16 %v366, %v365
        %v370 = vpack.c.b16 %v368, %v367
        %vm373 = vcmask 261120
        %v375 = vsel %vm373, %v345, 0
        %v378 = vsel %vm373, %v346, 0
        %v381 = vsel %vm373, %v347, 0
        %v384 = vsel %vm373, %v348, 0
        %v387 = vsel %vm373, %v349, 0
        %v390 = vsel %vm373, %v350, 0
        %v393 = vsel %vm373, %v351, 0
        %v396 = vsel %vm373, %v352, 0
        %v399 = vsel %vm373, %v353, 0
        %v402 = vsel %vm373, %v354, 0
        %v405 = vsel %vm373, %v355, 0
        %v408 = vsel %vm373, %v356, 0
        %v411 = vsel %vm373, %v357, 0
        %v414 = vsel %vm373, %v358, 0
        %v417 = vsel %vm373, %v359, 0
        %v420 = vsel %vm373, %v360, 0
        %422 = vmatprep.subr.bf16.mxu0 0
        %423 = vmatpush1.bf16.msra.mxu0 %v369
        %424 = vmatprep.subr.bf16.mxu0 0
        %425 = vmatpush1.bf16.msra.mxu0 %v370
        %426 = vmatprep.subr.bf16.mxu0 0
        %427 = vmatpush1.bf16.msra.mxu0 0
        %428 = vmatprep.subr.bf16.mxu0 0
        %429 = vmatpush1.bf16.msra.mxu0 0
        %430 = vmatprep.subr.bf16.mxu0 0
        %431 = vmatpush1.bf16.msra.mxu0 0
        %432 = vmatprep.subr.bf16.mxu0 0
        %433 = vmatpush1.bf16.msra.mxu0 0
        %434 = vmatprep.subr.bf16.mxu0 0
        %435 = vmatpush1.bf16.msra.mxu0 0
        %436 = vmatprep.subr.bf16.mxu0 0
        %437 = vmatpush1.bf16.msra.mxu0 0
        %438 = vmatprep.subr.bf16.mxu0 0
        %439 = vmatpush1.bf16.msra.mxu0 0
        %440 = vmatprep.subr.bf16.mxu0 0
        %441 = vmatpush1.bf16.msra.mxu0 0
        %442 = vmatprep.subr.bf16.mxu0 0
        %443 = vmatpush1.bf16.msra.mxu0 0
        %444 = vmatprep.subr.bf16.mxu0 0
        %445 = vmatpush1.bf16.msra.mxu0 0
        %446 = vmatprep.subr.bf16.mxu0 0
        %447 = vmatpush1.bf16.msra.mxu0 0
        %448 = vmatprep.subr.bf16.mxu0 0
        %449 = vmatpush1.bf16.msra.mxu0 0
        %450 = vmatprep.subr.bf16.mxu0 0
        %451 = vmatpush1.bf16.msra.mxu0 0
        %452 = vmatprep.subr.bf16.mxu0 0
        %453 = vmatpush1.bf16.msra.mxu0 0
        %454 = vmatprep.mubr.bf16.mxu0 0
        %455 = vmatmul.mubr.bf16.gmra.mrb[0].mxu0 %v375
        %v456 = vpop.f32.mrb[0].mxu0
        %v457 = vadd.f32 %v279, %v456
        %v458 = vpop.f32.mrb[0].mxu0
        %v459 = vpop.f32.mrb[0].mxu0
        %v460 = vadd.f32 %v279, %v459
        %v461 = vpop.f32.mrb[0].mxu0
        %462 = vmatprep.mubr.bf16.mxu0 0
        %463 = vmatmul.mubr.bf16.gmra.mrb[0].mxu0 %v378
        %v464 = vpop.f32.mrb[0].mxu0
        %v465 = vadd.f32 %v279, %v464
        %v466 = vpop.f32.mrb[0].mxu0
        %v467 = vpop.f32.mrb[0].mxu0
        %v468 = vadd.f32 %v279, %v467
        %v469 = vpop.f32.mrb[0].mxu0
        %470 = vmatprep.mubr.bf16.mxu0 0
        %471 = vmatmul.mubr.bf16.gmra.mrb[0].mxu0 %v381
        %v472 = vpop.f32.mrb[0].mxu0
        %v473 = vadd.f32 %v279, %v472
        %v474 = vpop.f32.mrb[0].mxu0
        %v475 = vpop.f32.mrb[0].mxu0
        %v476 = vadd.f32 %v279, %v475
        %v477 = vpop.f32.mrb[0].mxu0
        %478 = vmatprep.mubr.bf16.mxu0 0
        %479 = vmatmul.mubr.bf16.gmra.mrb[0].mxu0 %v384
        %v480 = vpop.f32.mrb[0].mxu0
        %v481 = vadd.f32 %v279, %v480
        %v482 = vpop.f32.mrb[0].mxu0
        %v483 = vpop.f32.mrb[0].mxu0
        %v484 = vadd.f32 %v279, %v483
        %v485 = vpop.f32.mrb[0].mxu0
        %486 = vmatprep.mubr.bf16.mxu0 0
        %487 = vmatmul.mubr.bf16.gmra.mrb[0].mxu0 %v387
        %v488 = vpop.f32.mrb[0].mxu0
        %v489 = vadd.f32 %v279, %v488
        %v490 = vpop.f32.mrb[0].mxu0
        %v491 = vpop.f32.mrb[0].mxu0
        %v492 = vadd.f32 %v279, %v491
        %v493 = vpop.f32.mrb[0].mxu0
        %494 = vmatprep.mubr.bf16.mxu0 0
        %495 = vmatmul.mubr.bf16.gmra.mrb[0].mxu0 %v390
        %v496 = vpop.f32.mrb[0].mxu0
        %v497 = vadd.f32 %v279, %v496
        %v498 = vpop.f32.mrb[0].mxu0
        %v499 = vpop.f32.mrb[0].mxu0
        %v500 = vadd.f32 %v279, %v499
        %v501 = vpop.f32.mrb[0].mxu0
        %502 = vmatprep.mubr.bf16.mxu0 0
        %503 = vmatmul.mubr.bf16.gmra.mrb[0].mxu0 %v393
        %v504 = vpop.f32.mrb[0].mxu0
        %v505 = vadd.f32 %v279, %v504
        %v506 = vpop.f32.mrb[0].mxu0
        %v507 = vpop.f32.mrb[0].mxu0
        %v508 = vadd.f32 %v279, %v507
        %v509 = vpop.f32.mrb[0].mxu0
        %510 = vmatprep.mubr.bf16.mxu0 0
        %511 = vmatmul.mubr.bf16.gmra.mrb[0].mxu0 %v396
        %v512 = vpop.f32.mrb[0].mxu0
        %v513 = vadd.f32 %v279, %v512
        %v514 = vpop.f32.mrb[0].mxu0
        %v515 = vpop.f32.mrb[0].mxu0
        %v516 = vadd.f32 %v279, %v515
        %v517 = vpop.f32.mrb[0].mxu0
        %518 = vmatprep.mubr.bf16.mxu0 0
        %519 = vmatmul.mubr.bf16.gmra.mrb[0].mxu0 %v399
        %v520 = vpop.f32.mrb[0].mxu0
        %v521 = vadd.f32 %v279, %v520
        %v522 = vpop.f32.mrb[0].mxu0
        %v523 = vpop.f32.mrb[0].mxu0
        %v524 = vadd.f32 %v279, %v523
        %v525 = vpop.f32.mrb[0].mxu0
        %526 = vmatprep.mubr.bf16.mxu0 0
        %527 = vmatmul.mubr.bf16.gmra.mrb[0].mxu0 %v402
        %v528 = vpop.f32.mrb[0].mxu0
        %v529 = vadd.f32 %v279, %v528
        %v530 = vpop.f32.mrb[0].mxu0
        %v531 = vpop.f32.mrb[0].mxu0
        %v532 = vadd.f32 %v279, %v531
        %v533 = vpop.f32.mrb[0].mxu0
        %534 = vmatprep.mubr.bf16.mxu0 0
        %535 = vmatmul.mubr.bf16.gmra.mrb[0].mxu0 %v405
        %v536 = vpop.f32.mrb[0].mxu0
        %v537 = vadd.f32 %v279, %v536
        %v538 = vpop.f32.mrb[0].mxu0
        %v539 = vpop.f32.mrb[0].mxu0
        %v540 = vadd.f32 %v279, %v539
        %v541 = vpop.f32.mrb[0].mxu0
        %542 = vmatprep.mubr.bf16.mxu0 0
        %543 = vmatmul.mubr.bf16.gmra.mrb[0].mxu0 %v408
        %v544 = vpop.f32.mrb[0].mxu0
        %v545 = vadd.f32 %v279, %v544
        %v546 = vpop.f32.mrb[0].mxu0
        %v547 = vpop.f32.mrb[0].mxu0
        %v548 = vadd.f32 %v279, %v547
        %v549 = vpop.f32.mrb[0].mxu0
        %550 = vmatprep.mubr.bf16.mxu0 0
        %551 = vmatmul.mubr.bf16.gmra.mrb[0].mxu0 %v411
        %v552 = vpop.f32.mrb[0].mxu0
        %v553 = vadd.f32 %v279, %v552
        %v554 = vpop.f32.mrb[0].mxu0
        %v555 = vpop.f32.mrb[0].mxu0
        %v556 = vadd.f32 %v279, %v555
        %v557 = vpop.f32.mrb[0].mxu0
        %558 = vmatprep.mubr.bf16.mxu0 0
        %559 = vmatmul.mubr.bf16.gmra.mrb[0].mxu0 %v414
        %v560 = vpop.f32.mrb[0].mxu0
        %v561 = vadd.f32 %v279, %v560
        %v562 = vpop.f32.mrb[0].mxu0
        %v563 = vpop.f32.mrb[0].mxu0
        %v564 = vadd.f32 %v279, %v563
        %v565 = vpop.f32.mrb[0].mxu0
        %566 = vmatprep.mubr.bf16.mxu0 0
        %567 = vmatmul.mubr.bf16.gmra.mrb[0].mxu0 %v417
        %v568 = vpop.f32.mrb[0].mxu0
        %v569 = vadd.f32 %v279, %v568
        %v570 = vpop.f32.mrb[0].mxu0
        %v571 = vpop.f32.mrb[0].mxu0
        %v572 = vadd.f32 %v279, %v571
        %v573 = vpop.f32.mrb[0].mxu0
        %574 = vmatprep.mubr.bf16.mxu0 0
        %575 = vmatmul.mubr.bf16.gmra.mrb[0].mxu0 %v420
        %v576 = vpop.f32.mrb[0].mxu0
        %v577 = vadd.f32 %v279, %v576
        %v578 = vpop.f32.mrb[0].mxu0
        %v579 = vpop.f32.mrb[0].mxu0
        %v580 = vadd.f32 %v279, %v579
        %v581 = vpop.f32.mrb[0].mxu0
        %582 = vdwg.mxu0
        %vm583 = vcmask 523264
        %584 = vst.msk [vmem:[%s234] sm:$0xff] %vm583, %v457
        %585 = vst.msk [vmem:[%s234 + $0x8] sm:$0xff] %vm583, %v460
        %586 = vst.msk [vmem:[%s234 + $0x10] sm:$0xff] %vm583, %v465
        %587 = vst.msk [vmem:[%s234 + $0x18] sm:$0xff] %vm583, %v468
        %588 = vst.msk [vmem:[%s234 + $0x20] sm:$0xff] %vm583, %v473
        %589 = vst.msk [vmem:[%s234 + $0x28] sm:$0xff] %vm583, %v476
        %590 = vst.msk [vmem:[%s234 + $0x30] sm:$0xff] %vm583, %v481
        %591 = vst.msk [vmem:[%s234 + $0x38] sm:$0xff] %vm583, %v484
        %592 = vst.msk [vmem:[%s234 + $0x40] sm:$0xff] %vm583, %v489
        %593 = vst.msk [vmem:[%s234 + $0x48] sm:$0xff] %vm583, %v492
        %594 = vst.msk [vmem:[%s234 + $0x50] sm:$0xff] %vm583, %v497
        %595 = vst.msk [vmem:[%s234 + $0x58] sm:$0xff] %vm583, %v500
        %596 = vst.msk [vmem:[%s234 + $0x60] sm:$0xff] %vm583, %v505
        %597 = vst.msk [vmem:[%s234 + $0x68] sm:$0xff] %vm583, %v508
        %598 = vst.msk [vmem:[%s234 + $0x70] sm:$0xff] %vm583, %v513
        %599 = vst.msk [vmem:[%s234 + $0x78] sm:$0xff] %vm583, %v516
        %600 = vst.msk [vmem:[%s234 + $0x80] sm:$0xff] %vm583, %v521
        %601 = vst.msk [vmem:[%s234 + $0x88] sm:$0xff] %vm583, %v524
        %602 = vst.msk [vmem:[%s234 + $0x90] sm:$0xff] %vm583, %v529
        %603 = vst.msk [vmem:[%s234 + $0x98] sm:$0xff] %vm583, %v532
        %604 = vst.msk [vmem:[%s234 + $0xa0] sm:$0xff] %vm583, %v537
        %605 = vst.msk [vmem:[%s234 + $0xa8] sm:$0xff] %vm583, %v540
        %606 = vst.msk [vmem:[%s234 + $0xb0] sm:$0xff] %vm583, %v545
        %607 = vst.msk [vmem:[%s234 + $0xb8] sm:$0xff] %vm583, %v548
        %608 = vst.msk [vmem:[%s234 + $0xc0] sm:$0xff] %vm583, %v553
        %609 = vst.msk [vmem:[%s234 + $0xc8] sm:$0xff] %vm583, %v556
        %610 = vst.msk [vmem:[%s234 + $0xd0] sm:$0xff] %vm583, %v561
        %611 = vst.msk [vmem:[%s234 + $0xd8] sm:$0xff] %vm583, %v564
        %612 = vst.msk [vmem:[%s234 + $0xe0] sm:$0xff] %vm583, %v569
        %613 = vst.msk [vmem:[%s234 + $0xe8] sm:$0xff] %vm583, %v572
        %614 = vst.msk [vmem:[%s234 + $0xf0] sm:$0xff] %vm583, %v577
        %615 = vst.msk [vmem:[%s234 + $0xf8] sm:$0xff] %vm583, %v580
        %s616 = sand.u32 %s113, 1
        %s617 = scalar_lea.sflag [#allocation4], %s616
        %s618 = sand.u32 %s113, 1
        %s619 = smul.addr %s618, 256
        %s620 = scalar_lea.vmem [#allocation8], %s619
        // Predicated region
        $region45: #{tpu_custom_call.1} parent=31 // pred_check
          %p621 = pneg %p123
        $region46: #{tpu_custom_call.1} parent=31 // pred_check_branch
          %623 = sbr.rel (%p621) target = $region48
        $region47: #{tpu_custom_call.1} parent=31 // pred_region
          %s624 = smul.u32 16, %s26
          %s626 = ssub.s32 4096, 4096
          %627 = vsyncadd %s617, %s626
          %s628 = smul.addr %s624, 2
          %s629 = smul.addr %s25, 32
          %s630 = sadd.s32 %s628, %s629
          %s631 = smul.addr %s630, 128
          %s632 = scalar_lea.hbm %s3, %s631
          %s633 = sshll.u32 %s620, 4
          %s634 = int_to_ptr.vmem [resolvable:$true] %s633
          %639 = dma.vmem_to_hbm [thread:$0]  %s634, 4096, %s632, %s617, 128, 128, 8
        $region48: #{tpu_custom_call.1} parent=31 // pred_fallthru
          _
      $region32: #{tpu_custom_call.1} parent=5 // pred_fallthru
        _
      %p640 = scmp.le.s32.totalorder 2, %s16
      // Predicated region
      $region49: #{tpu_custom_call.1} parent=5 // pred_check
        %p641 = pneg %p640
      $region50: #{tpu_custom_call.1} parent=5 // pred_check_branch
        %643 = sbr.rel (%p641) target = $region52
      $region51: #{tpu_custom_call.1} parent=5 // pred_region
        %s644 = ssub.s32 %s16, 2
        // Predicated region
        $region53: #{tpu_custom_call.1} parent=51 // pred_check
          %p645 = pneg %p129
        $region54: #{tpu_custom_call.1} parent=51 // pred_check_branch
          %647 = sbr.rel (%p645) target = $region56
        $region55: #{tpu_custom_call.1} parent=51 // pred_region
          %s648 = sand.u32 %s114, 1
          %s649 = scalar_lea.sflag [#allocation4], %s648
          %s650 = sand.u32 %s114, 1
          %s651 = smul.addr %s650, 256
          %s652 = scalar_lea.vmem [#allocation8], %s651
          %653 = dma.done %s649, 4096
        $region56: #{tpu_custom_call.1} parent=51 // pred_fallthru
          _
      $region52: #{tpu_custom_call.1} parent=5 // pred_fallthru
        _
    $region6: #{tpu_custom_call.1} parent=1 // loop_footer
      %s20 = sadd.s32 1, %s16
    $region7: #{tpu_custom_call.1} parent=1 // loop_footer_branch
      %15 = sbr.rel target = $region3
    $region8: #{tpu_custom_call.1} parent=1 // loop_exit
      _
    %654 = vsyncpa [#allocation3], 1
    %s655 = scalar_lea.sflag [#allocation3], 1
    %656 = vsyncpa %s655, 1
    %657 = vsyncpa [#allocation6], 1
    %658 = vsyncpa [#allocation4], 1
    %s659 = scalar_lea.sflag [#allocation4], 1
    %660 = vsyncpa %s659, 1

</llo_original>
